<compile_context>
chip_gen: v6e
topology: v6e:2x2x1
jax: 0.10.0
libtpu: 0.0.40
codegen_flags: <defaults>
</compile_context>

<pallas_src>
import functools

import jax
import jax.numpy as jnp
from jax import lax
from jax.experimental import pallas as pl
from jax.experimental.pallas import tpu as pltpu

EPS = 1e-6  # matches torch.nn.functional.pairwise_distance default eps


def _log1p_compensated(x):
    """log1p(x) for x >= 0 built only from ops guaranteed to lower in Mosaic."""
    t = 1.0 + x
    return jnp.log(t) + (x - (t - 1.0)) / t


# --------------------------------------------------------------------------
# Pallas kernel: one paired row-tile {i, i+hb} of the Cauchy loss partials.
# --------------------------------------------------------------------------
def _cauchy_pair_kernel(za_ref, zb_ref, out_ref):
    # za_ref : (T, D) rows of z tile i        (native dtype, upcast in-kernel)
    # zb_ref : (T, D) rows of z tile i + hb
    # out_ref: (8, 128): lane0 = sum log(1+pd_ii), lane1 = sum qii,
    #          lane2 = sum qij over rows 0..T-2 of both orientations
    #          (the per-tile wrap row is added back in the JAX epilogue).
    a = za_ref[...].astype(jnp.float32)
    b = zb_ref[...].astype(jnp.float32)
    t_rows = a.shape[0]

    # ---- attractive part, both orientations (eps added after the subtract) ---
    diff = a - b
    d1 = diff + EPS                       # z1 = tile i,    z2 = tile i+hb
    d2 = EPS - diff                       # z1 = tile i+hb, z2 = tile i
    pd1 = jnp.sum(d1 * d1, axis=-1, keepdims=True)      # (T, 1)
    pd2 = jnp.sum(d2 * d2, axis=-1, keepdims=True)
    s_attr = jnp.sum(_log1p_compensated(pd1)) + jnp.sum(_log1p_compensated(pd2))
    # qii only feeds the update_s buffer -> approx reciprocal (EUP slot).
    s_qii = (jnp.sum(pl.reciprocal(1.0 + pd1, approx=True)) +
             jnp.sum(pl.reciprocal(1.0 + pd2, approx=True)))

    # ---- repulsive part: partner row is z2 shifted by one row ----------------
    # In-tile roll (XLU); the last row's true partner lives in the *next* tile
    # and is handled in the epilogue, so its contribution is masked out here.
    b_shift = pltpu.roll(b, shift=t_rows - 1, axis=0)   # b_shift[l] = b[(l+1)%T]
    a_shift = pltpu.roll(a, shift=t_rows - 1, axis=0)
    e1 = a - b_shift + EPS
    e2 = b - a_shift + EPS
    q1 = 1.0 / (1.0 + jnp.sum(e1 * e1, axis=-1, keepdims=True))  # exact: loss path
    q2 = 1.0 / (1.0 + jnp.sum(e2 * e2, axis=-1, keepdims=True))
    row = lax.broadcasted_iota(jnp.int32, q1.shape, 0)
    s_qij = jnp.sum(jnp.where(row < t_rows - 1, q1 + q2, 0.0))

    lane = lax.broadcasted_iota(jnp.int32, (8, 128), 1)
    out_ref[...] = jnp.where(lane == 0, s_attr,
                     jnp.where(lane == 1, s_qii,
                       jnp.where(lane == 2, s_qij, 0.0)))


def _cauchy_sums_pallas(z, tile_rows, vmem_limit):
    """(sum log(1+pd_ii), sum qii, sum qij) over all 2B rows — one HBM pass."""
    n2, d = z.shape
    B = n2 // 2
    T = tile_rows
    nb = n2 // T            # total row tiles
    hb = B // T             # grid length; z1 tile j pairs with z2 tile j + hb

    partials = pl.pallas_call(
        _cauchy_pair_kernel,
        out_shape=jax.ShapeDtypeStruct((hb, 8, 128), jnp.float32),
        grid_spec=pltpu.PrefetchScalarGridSpec(
            num_scalar_prefetch=0,
            grid=(hb,),
            in_specs=[
                pl.BlockSpec((T, d), lambda i: (i, 0)),            # tile i
                pl.BlockSpec((T, d), lambda i, _hb=hb: (i + _hb, 0)),  # tile i+hb
            ],
            out_specs=pl.BlockSpec((None, 8, 128), lambda i: (i, 0, 0)),
        ),
        compiler_params=pltpu.CompilerParams(
            dimension_semantics=("parallel",),   # megacore-shardable on v7x
            vmem_limit_bytes=vmem_limit,         # generation-gated budget
        ),
    )(z, z)

    sums = jnp.sum(partials[:, 0, :], axis=0)    # tiny final reduce in XLA
    s_attr, s_qii, s_qij = sums[0], sums[1], sums[2]

    # Wrap correction: the last row of every z1 tile pairs (for qij) with the
    # first row of the *next* z2 tile, which the in-tile roll could not see.
    a_rows = z[T - 1::T].astype(jnp.float32)             # (nb, D) last rows
    first_rows = z[0::T].astype(jnp.float32)             # (nb, D) first rows
    b_rows = jnp.roll(first_rows, shift=-(hb + 1), axis=0)
    e = a_rows - b_rows + EPS
    s_qij = s_qij + jnp.sum(1.0 / (1.0 + jnp.sum(e * e, axis=-1)))
    return s_attr, s_qii, s_qij


def _cauchy_sums_reference(z):
    """Pure-JAX fallback for degenerate shapes (B % 8 != 0)."""
    z = z.astype(jnp.float32)
    B = z.shape[0] // 2
    z2 = jnp.roll(z, shift=-B, axis=0)               # == cat([zj, zi])
    z2r = jnp.roll(z, shift=-(B + 1), axis=0)        # == roll(cat([zj, zi]), -1)
    pd_ii = jnp.sum((z - z2 + EPS) ** 2, axis=-1)
    pd_ij = jnp.sum((z - z2r + EPS) ** 2, axis=-1)
    return (jnp.sum(jnp.log1p(pd_ii)),
            jnp.sum(1.0 / (1.0 + pd_ii)),
            jnp.sum(1.0 / (1.0 + pd_ij)))


def _vmem_budget():
    """(vmem_limit_bytes, max_tile_bytes), gated on the chip's physical VMEM."""
    cap = 64 * 1024 * 1024                       # conservative default (v7x-sized)
    try:
        cap = int(pltpu.get_tpu_info().vmem_capacity_bytes)
    except Exception:
        pass
    if cap >= 100 * 1024 * 1024:                 # v5e / v6e: 128 MiB VMEM
        return 64 * 1024 * 1024, 4 * 1024 * 1024
    return 48 * 1024 * 1024, 3 * 1024 * 1024     # v7x: 64 MiB VMEM


def _choose_tile_rows(B, D, itemsize, max_tile_bytes, target_rows=2048):
    """Largest T with T | B, aligned rows, f32 tile <= budget; prefers a grid
    of >= 2 steps (even length if possible) so a v7x megacore stays balanced."""
    if B < 8 or B % 8 != 0:
        return None

    def pick(align):
        cap = min(B, target_rows, max(align, max_tile_bytes // max(1, D * 4)))
        cap -= cap % align
        if cap < align:
            return None
        cands = [t for t in range(align, cap + 1, align) if B % t == 0]
        if not cands:
            return None
        even = [t for t in cands if (B // t) >= 2 and (B // t) % 2 == 0]
        ge2 = [t for t in cands if (B // t) >= 2]
        return max(even or ge2 or cands)

    align = 16 if itemsize == 2 else 8           # bf16/f16 sublane packing
    t = pick(align)
    if t is None and align != 8:
        t = pick(8)
    return t


# --------------------------------------------------------------------------
# Fully on-device forward step (loss + update_s), jittable.
# --------------------------------------------------------------------------
@functools.partial(jax.jit, static_argnames=("rho", "tile_rows", "vmem_limit"))
def _cauchy_step(z, s_inv, N, alpha, *, rho, tile_rows, vmem_limit):
    n = jnp.float32(z.shape[0])

    if tile_rows is None:
        # TODO(synk): batches with B % 8 != 0 use a plain-JAX path; pad the
        # batch (or add a single-block Pallas variant) if this ever matters.
        s_attr, sum_qii, sum_qij = _cauchy_sums_reference(z)
    else:
        s_attr, sum_qii, sum_qij = _cauchy_sums_pallas(z, tile_rows, vmem_limit)

    # loss = attractive.mean() + repulsive.mean(), Z_hat folded out of the kernel
    z_hat = s_inv / (N * N)
    loss = s_attr / n + sum_qij / (n * z_hat)

    # ---- update_s (torch.no_grad buffer EMA), stays on device ---------------
    xi = alpha * sum_qii + (1.0 - alpha) * sum_qij
    omega = n                                     # alpha*2B + (1-alpha)*2B == 2B
    if rho < 0:
        momentum = N / (N + omega * 0.01)
    else:
        momentum = jnp.float32(rho)
    s_inv_new = momentum * s_inv + (1.0 - momentum) * (N * N) * (xi / omega)
    return loss, s_inv_new


class CauchyLoss:
    """JAX/Pallas port of criterions.scelosses.CauchyLoss (forward + update_s)."""

    def __init__(self, N=60000, rho=-1, alpha=0.5, S_init=2.0):
        self.N = jnp.float32(N)
        self.alpha = jnp.float32(alpha)
        self.rho = float(rho)                          # static: sign picks momentum rule
        self.s_inv = jnp.float32(float(N) ** S_init)   # buffer, stays on device

    def forward(self, z):
        z = jnp.asarray(z)
        if not jnp.issubdtype(z.dtype, jnp.floating):
            z = z.astype(jnp.float32)
        n2, d = z.shape
        vmem_limit, max_tile_bytes = _vmem_budget()
        tile_rows = _choose_tile_rows(n2 // 2, d, z.dtype.itemsize, max_tile_bytes)
        loss, self.s_inv = _cauchy_step(z, self.s_inv, self.N, self.alpha,
                                        rho=self.rho, tile_rows=tile_rows,
                                        vmem_limit=vmem_limit)
        return loss

    __call__ = forward


# --------------------------------------------------------------------------
# Pure-JAX reference mirroring the torch forward (for the self-check).
# --------------------------------------------------------------------------
def _reference_forward(z, s_inv, N):
    B = z.shape[0] // 2
    zi, zj = z[:B], z[B:]
    z1 = jnp.concatenate([zi, zj], axis=0)
    z2 = jnp.concatenate([zj, zi], axis=0)
    pd_ii = jnp.sum((z1 - z2 + EPS) ** 2, axis=-1)
    qii = 1.0 / (1.0 + pd_ii)
    attractive = -jnp.log(qii)
    z2r = jnp.roll(z2, shift=-1, axis=0)
    pd_ij = jnp.sum((z1 - z2r + EPS) ** 2, axis=-1)
    qij = 1.0 / (1.0 + pd_ij)
    z_hat = s_inv / (N * N)
    repulsive = qij / z_hat
    return attractive.mean() + repulsive.mean()


if __name__ == "__main__":
    key = jax.random.PRNGKey(0)
    B, D = 64, 128                                   # z has shape (2B, D)
    z = jax.random.normal(key, (2 * B, D), dtype=jnp.float32)

    # f32 path
    mod = CauchyLoss(N=60000, rho=-1, alpha=0.5, S_init=2.0)
    ref_loss = _reference_forward(z, mod.s_inv, mod.N)   # uses pre-update s_inv
    loss = mod.forward(z)
    jax.block_until_ready(loss)
    if not jnp.allclose(loss, ref_loss, rtol=1e-4, atol=1e-4):
        raise AssertionError(
            f"f32 mismatch: pallas={float(loss)} reference={float(ref_loss)}")

    # bf16 path (halved HBM traffic; kernel upcasts to f32 for the math)
    mod_bf = CauchyLoss(N=60000, rho=-1, alpha=0.5, S_init=2.0)
    z_bf = z.astype(jnp.bfloat16)
    ref_bf = _reference_forward(z_bf.astype(jnp.float32), mod_bf.s_inv, mod_bf.N)
    loss_bf = mod_bf.forward(z_bf)
    jax.block_until_ready(loss_bf)
    if not jnp.allclose(loss_bf, ref_bf, rtol=1e-3, atol=1e-3):
        raise AssertionError(
            f"bf16 mismatch: pallas={float(loss_bf)} reference={float(ref_bf)}")

    print("KERNEL_OK")
</pallas_src>

<mosaic_0001>
module attributes {stable_mosaic.version = 11 : i64} {
  func.func @_cauchy_pair_kernel(%arg0: i32, %arg1: memref<32x128xf32, #tpu.memory_space<vmem>>, %arg2: memref<32x128xf32, #tpu.memory_space<vmem>>, %arg3: memref<1x8x128xf32, #tpu.memory_space<vmem>>) attributes {dimension_semantics = [#tpu.dimension_semantics<parallel>], iteration_bounds = array<i64: 2>, scalar_prefetch = 0 : i64, scratch_operands = 0 : i64, tpu.core_type = #tpu.core_type<tc>, window_params = [{transform_indices = @transform_0, window_bounds = array<i64: 32, 128>}, {transform_indices = @transform_1, window_bounds = array<i64: 32, 128>}, {transform_indices = @transform_2, window_bounds = array<i64: 1, 8, 128>}]} {
    %c0 = arith.constant 0 : index
    %c0_0 = arith.constant 0 : index
    %0 = vector.load %arg1[%c0, %c0_0] : memref<32x128xf32, #tpu.memory_space<vmem>>, vector<32x128xf32>
    %c0_1 = arith.constant 0 : index
    %c0_2 = arith.constant 0 : index
    %1 = vector.load %arg2[%c0_1, %c0_2] : memref<32x128xf32, #tpu.memory_space<vmem>>, vector<32x128xf32>
    %2 = arith.subf %0, %1 : vector<32x128xf32>
    %cst = arith.constant 9.99999997E-7 : f32
    %3 = vector.broadcast %cst : f32 to vector<32x128xf32>
    %4 = arith.addf %2, %3 : vector<32x128xf32>
    %cst_3 = arith.constant 9.99999997E-7 : f32
    %5 = vector.broadcast %cst_3 : f32 to vector<32x128xf32>
    %6 = arith.subf %5, %2 : vector<32x128xf32>
    %7 = arith.mulf %4, %4 : vector<32x128xf32>
    %cst_4 = arith.constant dense<0.000000e+00> : vector<32xf32>
    %8 = vector.multi_reduction <add>, %7, %cst_4 [1] : vector<32x128xf32> to vector<32xf32>
    %9 = vector.shape_cast %8 : vector<32xf32> to vector<32x1xf32>
    %10 = arith.mulf %6, %6 : vector<32x128xf32>
    %cst_5 = arith.constant dense<0.000000e+00> : vector<32xf32>
    %11 = vector.multi_reduction <add>, %10, %cst_5 [1] : vector<32x128xf32> to vector<32xf32>
    %12 = vector.shape_cast %11 : vector<32xf32> to vector<32x1xf32>
    %cst_6 = arith.constant 1.000000e+00 : f32
    %13 = vector.broadcast %cst_6 : f32 to vector<32x1xf32>
    %14 = arith.addf %13, %9 : vector<32x1xf32>
    %15 = math.log %14 : vector<32x1xf32>
    %cst_7 = arith.constant 1.000000e+00 : f32
    %16 = vector.broadcast %cst_7 : f32 to vector<32x1xf32>
    %17 = arith.subf %14, %16 : vector<32x1xf32>
    %18 = arith.subf %9, %17 : vector<32x1xf32>
    %19 = arith.divf %18, %14 : vector<32x1xf32>
    %20 = arith.addf %15, %19 : vector<32x1xf32>
    %21 = vector.shape_cast %20 : vector<32x1xf32> to vector<1x32x1xf32>
    %cst_8 = arith.constant dense<0.000000e+00> : vector<1xf32>
    %22 = vector.multi_reduction <add>, %21, %cst_8 [1, 2] : vector<1x32x1xf32> to vector<1xf32>
    %23 = vector.shape_cast %22 : vector<1xf32> to vector<1x1x1xf32>
    %24 = vector.extract %23[0, 0, 0] : f32 from vector<1x1x1xf32>
    %cst_9 = arith.constant 1.000000e+00 : f32
    %25 = vector.broadcast %cst_9 : f32 to vector<32x1xf32>
    %26 = arith.addf %25, %12 : vector<32x1xf32>
    %27 = math.log %26 : vector<32x1xf32>
    %cst_10 = arith.constant 1.000000e+00 : f32
    %28 = vector.broadcast %cst_10 : f32 to vector<32x1xf32>
    %29 = arith.subf %26, %28 : vector<32x1xf32>
    %30 = arith.subf %12, %29 : vector<32x1xf32>
    %31 = arith.divf %30, %26 : vector<32x1xf32>
    %32 = arith.addf %27, %31 : vector<32x1xf32>
    %33 = vector.shape_cast %32 : vector<32x1xf32> to vector<1x32x1xf32>
    %cst_11 = arith.constant dense<0.000000e+00> : vector<1xf32>
    %34 = vector.multi_reduction <add>, %33, %cst_11 [1, 2] : vector<1x32x1xf32> to vector<1xf32>
    %35 = vector.shape_cast %34 : vector<1xf32> to vector<1x1x1xf32>
    %36 = vector.extract %35[0, 0, 0] : f32 from vector<1x1x1xf32>
    %37 = arith.addf %24, %36 : f32
    %cst_12 = arith.constant 1.000000e+00 : f32
    %38 = vector.broadcast %cst_12 : f32 to vector<32x1xf32>
    %39 = arith.addf %38, %9 : vector<32x1xf32>
    %40 = tpu.reciprocal %39 {approx = true} : vector<32x1xf32> -> vector<32x1xf32>
    %41 = vector.shape_cast %40 : vector<32x1xf32> to vector<1x32x1xf32>
    %cst_13 = arith.constant dense<0.000000e+00> : vector<1xf32>
    %42 = vector.multi_reduction <add>, %41, %cst_13 [1, 2] : vector<1x32x1xf32> to vector<1xf32>
    %43 = vector.shape_cast %42 : vector<1xf32> to vector<1x1x1xf32>
    %44 = vector.extract %43[0, 0, 0] : f32 from vector<1x1x1xf32>
    %cst_14 = arith.constant 1.000000e+00 : f32
    %45 = vector.broadcast %cst_14 : f32 to vector<32x1xf32>
    %46 = arith.addf %45, %12 : vector<32x1xf32>
    %47 = tpu.reciprocal %46 {approx = true} : vector<32x1xf32> -> vector<32x1xf32>
    %48 = vector.shape_cast %47 : vector<32x1xf32> to vector<1x32x1xf32>
    %cst_15 = arith.constant dense<0.000000e+00> : vector<1xf32>
    %49 = vector.multi_reduction <add>, %48, %cst_15 [1, 2] : vector<1x32x1xf32> to vector<1xf32>
    %50 = vector.shape_cast %49 : vector<1xf32> to vector<1x1x1xf32>
    %51 = vector.extract %50[0, 0, 0] : f32 from vector<1x1x1xf32>
    %52 = arith.addf %44, %51 : f32
    %c31_i32 = arith.constant 31 : i32
    %53 = tpu.dynamic_rotate %1 by %c31_i32 dim 0 : vector<32x128xf32>, i32 -> vector<32x128xf32>
    %c31_i32_16 = arith.constant 31 : i32
    %54 = tpu.dynamic_rotate %0 by %c31_i32_16 dim 0 : vector<32x128xf32>, i32 -> vector<32x128xf32>
    %55 = arith.subf %0, %53 : vector<32x128xf32>
    %cst_17 = arith.constant 9.99999997E-7 : f32
    %56 = vector.broadcast %cst_17 : f32 to vector<32x128xf32>
    %57 = arith.addf %55, %56 : vector<32x128xf32>
    %58 = arith.subf %1, %54 : vector<32x128xf32>
    %cst_18 = arith.constant 9.99999997E-7 : f32
    %59 = vector.broadcast %cst_18 : f32 to vector<32x128xf32>
    %60 = arith.addf %58, %59 : vector<32x128xf32>
    %61 = arith.mulf %57, %57 : vector<32x128xf32>
    %cst_19 = arith.constant dense<0.000000e+00> : vector<32xf32>
    %62 = vector.multi_reduction <add>, %61, %cst_19 [1] : vector<32x128xf32> to vector<32xf32>
    %63 = vector.shape_cast %62 : vector<32xf32> to vector<32x1xf32>
    %cst_20 = arith.constant 1.000000e+00 : f32
    %64 = vector.broadcast %cst_20 : f32 to vector<32x1xf32>
    %65 = arith.addf %64, %63 : vector<32x1xf32>
    %cst_21 = arith.constant 1.000000e+00 : f32
    %66 = vector.broadcast %cst_21 : f32 to vector<32x1xf32>
    %67 = arith.divf %66, %65 : vector<32x1xf32>
    %68 = arith.mulf %60, %60 : vector<32x128xf32>
    %cst_22 = arith.constant dense<0.000000e+00> : vector<32xf32>
    %69 = vector.multi_reduction <add>, %68, %cst_22 [1] : vector<32x128xf32> to vector<32xf32>
    %70 = vector.shape_cast %69 : vector<32xf32> to vector<32x1xf32>
    %cst_23 = arith.constant 1.000000e+00 : f32
    %71 = vector.broadcast %cst_23 : f32 to vector<32x1xf32>
    %72 = arith.addf %71, %70 : vector<32x1xf32>
    %cst_24 = arith.constant 1.000000e+00 : f32
    %73 = vector.broadcast %cst_24 : f32 to vector<32x1xf32>
    %74 = arith.divf %73, %72 : vector<32x1xf32>
    %75 = tpu.iota {dimensions = array<i32: 0>} : vector<32x1xi32>
    %c31_i32_25 = arith.constant 31 : i32
    %76 = vector.broadcast %c31_i32_25 : i32 to vector<32x1xi32>
    %77 = arith.cmpi slt, %75, %76 : vector<32x1xi32>
    %78 = arith.addf %67, %74 : vector<32x1xf32>
    %cst_26 = arith.constant 0.000000e+00 : f32
    %79 = vector.broadcast %cst_26 : f32 to vector<32x1xf32>
    %80 = arith.select %77, %78, %79 : vector<32x1xi1>, vector<32x1xf32>
    %81 = vector.shape_cast %80 : vector<32x1xf32> to vector<1x32x1xf32>
    %cst_27 = arith.constant dense<0.000000e+00> : vector<1xf32>
    %82 = vector.multi_reduction <add>, %81, %cst_27 [1, 2] : vector<1x32x1xf32> to vector<1xf32>
    %83 = vector.shape_cast %82 : vector<1xf32> to vector<1x1x1xf32>
    %84 = vector.extract %83[0, 0, 0] : f32 from vector<1x1x1xf32>
    %85 = tpu.iota {dimensions = array<i32: 1>} : vector<8x128xi32>
    %c0_i32 = arith.constant 0 : i32
    %86 = vector.broadcast %c0_i32 : i32 to vector<8x128xi32>
    %87 = arith.cmpi eq, %85, %86 : vector<8x128xi32>
    %c1_i32 = arith.constant 1 : i32
    %88 = vector.broadcast %c1_i32 : i32 to vector<8x128xi32>
    %89 = arith.cmpi eq, %85, %88 : vector<8x128xi32>
    %c2_i32 = arith.constant 2 : i32
    %90 = vector.broadcast %c2_i32 : i32 to vector<8x128xi32>
    %91 = arith.cmpi eq, %85, %90 : vector<8x128xi32>
    %cst_28 = arith.constant 0.000000e+00 : f32
    %92 = vector.broadcast %84 : f32 to vector<8x128xf32>
    %93 = vector.broadcast %cst_28 : f32 to vector<8x128xf32>
    %94 = arith.select %91, %92, %93 : vector<8x128xi1>, vector<8x128xf32>
    %95 = vector.broadcast %52 : f32 to vector<8x128xf32>
    %96 = arith.select %89, %95, %94 : vector<8x128xi1>, vector<8x128xf32>
    %97 = vector.broadcast %37 : f32 to vector<8x128xf32>
    %98 = arith.select %87, %97, %96 : vector<8x128xi1>, vector<8x128xf32>
    %c0_29 = arith.constant 0 : index
    %c0_30 = arith.constant 0 : index
    %c0_31 = arith.constant 0 : index
    %99 = vector.load %arg3[%c0_29, %c0_30, %c0_31] : memref<1x8x128xf32, #tpu.memory_space<vmem>>, vector<1x8x128xf32>
    %100 = vector.shape_cast %99 : vector<1x8x128xf32> to vector<8x128xf32>
    %101 = vector.shape_cast %98 : vector<8x128xf32> to vector<1x8x128xf32>
    tpu.vector_store %arg3[%c0_29, %c0_30, %c0_31], %101 {strides = array<i32>} : memref<1x8x128xf32, #tpu.memory_space<vmem>>, vector<1x8x128xf32>,
    return
  }
  func.func @transform_0(%arg0: i32) -> (i32, i32) {
    %c0_i32 = arith.constant 0 : i32
    %c0_i32_0 = arith.constant 0 : i32
    return %arg0, %c0_i32 : i32, i32
  }
  func.func @transform_1(%arg0: i32) -> (i32, i32) {
    %c2_i32 = arith.constant 2 : i32
    %0 = arith.addi %arg0, %c2_i32 : i32
    %c0_i32 = arith.constant 0 : i32
    %c0_i32_0 = arith.constant 0 : i32
    return %0, %c0_i32 : i32, i32
  }
  func.func @transform_2(%arg0: i32) -> (i32, i32, i32) {
    %c0_i32 = arith.constant 0 : i32
    %c0_i32_0 = arith.constant 0 : i32
    %c0_i32_1 = arith.constant 0 : i32
    return %arg0, %c0_i32, %c0_i32_0 : i32, i32, i32
  }
}

</mosaic_0001>

<llo_original>
// kernel: _cauchy_step.1
$region0: #{_cauchy_step.1}
  #allocation0 [shape = 'u32[]', space=smem, size = 0x4, offset = 0x4, fixed_abs, tag = 'smem constant byte address 0x4 - core index']
  #allocation1 [shape = 'u32[144,128]{1,0:T(1,128)}', space=vmem, size = 0x12000, scoped, tag = 'internal scratch']
  %s0 = inlined_call_operand.hbm [shape: f32[128,128], index: 0, kind: input, shape index: {}, may-alias: {0,1}]
  %s1 = inlined_call_operand.hbm [shape: f32[128,128], index: 1, kind: input, shape index: {}, may-alias: {0,1}]
  %s2 = inlined_call_operand.vmem [shape: f32[2,8,128], index: 2, kind: output, shape index: {}]
  %s3 = sld [smem:[#allocation0]]
  $region49: #{_cauchy_step.1} parent=0
    _
  %s5 = ssub.s32 1, %s3
  %s6 = scalar_select 0, %s5, %s3
  $region1: #{_cauchy_step.1} parent=0
    #allocation2 [shape = 'u8[32768]{0}', space=vmem, size = 0x8000, scoped, tag = 'input window, operand 0']
    #allocation3 [shape = 's32[2]{0}', space=sflag, size = 0x8, scoped, tag = 'scoped memory for _cauchy_step.1']
    #allocation4 [shape = 'u8[32768]{0}', space=vmem, size = 0x8000, scoped, tag = 'input window, operand 1']
    #allocation5 [shape = 's32[2]{0}', space=sflag, size = 0x8, scoped, tag = 'scoped memory for _cauchy_step.1']
    %7 = vsyncpa [#allocation3], 0
    %s8 = scalar_lea.sflag [#allocation3], 1
    %9 = vsyncpa %s8, 0
    %10 = vsyncpa [#allocation5], 0
    %s11 = scalar_lea.sflag [#allocation5], 1
    %12 = vsyncpa %s11, 0
    loop: start=0, step=1, limit=4
    $region2: #{_cauchy_step.1} parent=1 // loop_pre_header
      _
    $region3: #{_cauchy_step.1} parent=1 // loop_header
      %s14 = sphi 0, %s18
      %p15 = scmp.ge.s32.totalorder %s14, 4
      %s24 = sphi 0, %s26
      %s27 = sphi 0, %s24
      %s28 = sphi 0, %s27
      %s44 = sphi 0, %s28
      %s52 = sphi 0, %s54
      %s55 = sphi 0, %s52
      %s56 = sphi 0, %s55
      %s72 = sphi 0, %s56
      %s78 = sphi 0, %s80
      %s81 = sphi 0, %s78
      %s82 = sphi 0, %s81
      %s98 = sphi 0, %s82
    $region4: #{_cauchy_step.1} parent=1 // loop_header_branch
      %17 = sbr.rel (%p15) target = $region8
    $region5: #{_cauchy_step.1} parent=1 // loop_body
      %s19 = ssub.s32 %s14, 1
      %s20 = ssub.s32 %s14, 2
      %s21 = sadd.s32 %s14, 1
      %s22 = ssub.s32 %s14, %s21
      %p23 = scmp.eq.s32.totalorder %s22, 0
      %s25 = sadd.s32 %s24, 1
      %s26 = scalar_select %p23, %s24, %s25
      %p29 = pneg %p23
      %p30 = scmp.eq.s32.totalorder %s14, 1
      %p31 = por %p29, %p30
      %p32 = scmp.ne.s32.totalorder %s24, %s27
      %p33 = scmp.eq.s32.totalorder %s14, 0
      %p34 = por %p32, %p33
      %p35 = scmp.ne.s32.totalorder %s24, %s27
      %p36 = scmp.eq.s32.totalorder %s19, 1
      %p37 = por %p35, %p36
      %p38 = scmp.ne.s32.totalorder %s27, %s28
      %p39 = scmp.eq.s32.totalorder %s19, 0
      %p40 = por %p38, %p39
      %p41 = scmp.ne.s32.totalorder %s27, %s28
      %p42 = scmp.eq.s32.totalorder %s20, 1
      %p43 = por %p41, %p42
      %p45 = scmp.ne.s32.totalorder %s28, %s44
      %p46 = scmp.eq.s32.totalorder %s20, 0
      %p47 = por %p45, %p46
      %s48 = sadd.s32 %s14, 2
      %s49 = sadd.s32 %s21, 2
      %s50 = ssub.s32 %s48, %s49
      %p51 = scmp.eq.s32.totalorder %s50, 0
      %s53 = sadd.s32 %s52, 1
      %s54 = scalar_select %p51, %s52, %s53
      %p57 = pneg %p51
      %p58 = scmp.eq.s32.totalorder %s14, 1
      %p59 = por %p57, %p58
      %p60 = scmp.ne.s32.totalorder %s52, %s55
      %p61 = scmp.eq.s32.totalorder %s14, 0
      %p62 = por %p60, %p61
      %p63 = scmp.ne.s32.totalorder %s52, %s55
      %p64 = scmp.eq.s32.totalorder %s19, 1
      %p65 = por %p63, %p64
      %p66 = scmp.ne.s32.totalorder %s55, %s56
      %p67 = scmp.eq.s32.totalorder %s19, 0
      %p68 = por %p66, %p67
      %p69 = scmp.ne.s32.totalorder %s55, %s56
      %p70 = scmp.eq.s32.totalorder %s20, 1
      %p71 = por %p69, %p70
      %p73 = scmp.ne.s32.totalorder %s56, %s72
      %p74 = scmp.eq.s32.totalorder %s20, 0
      %p75 = por %p73, %p74
      %s76 = ssub.s32 %s14, %s21
      %p77 = scmp.eq.s32.totalorder %s76, 0
      %s79 = sadd.s32 %s78, 1
      %s80 = scalar_select %p77, %s78, %s79
      %p83 = pneg %p77
      %p84 = scmp.eq.s32.totalorder %s14, 1
      %p85 = por %p83, %p84
      %p86 = scmp.ne.s32.totalorder %s78, %s81
      %p87 = scmp.eq.s32.totalorder %s14, 0
      %p88 = por %p86, %p87
      %p89 = scmp.ne.s32.totalorder %s78, %s81
      %p90 = scmp.eq.s32.totalorder %s19, 1
      %p91 = por %p89, %p90
      %p92 = scmp.ne.s32.totalorder %s81, %s82
      %p93 = scmp.eq.s32.totalorder %s19, 0
      %p94 = por %p92, %p93
      %p95 = scmp.ne.s32.totalorder %s81, %s82
      %p96 = scmp.eq.s32.totalorder %s20, 1
      %p97 = por %p95, %p96
      %p99 = scmp.ne.s32.totalorder %s82, %s98
      %p100 = scmp.eq.s32.totalorder %s20, 0
      %p101 = por %p99, %p100
      %p102 = scmp.le.s32.totalorder 1, %s14
      %p103 = scmp.lt.s32.totalorder %s14, 3
      %p104 = pnand %p102, %p103
      %p105 = pneg %p104
      // Predicated region
      $region9: #{_cauchy_step.1} parent=5 // pred_check
        _
      $region10: #{_cauchy_step.1} parent=5 // pred_check_branch
        %107 = sbr.rel (%p104) target = $region12
      $region11: #{_cauchy_step.1} parent=5 // pred_region
        %s108 = ssub.s32 %s14, 1
      $region12: #{_cauchy_step.1} parent=5 // pred_fallthru
        _
      %p109 = scmp.lt.s32.totalorder %s14, 2
      // Predicated region
      $region13: #{_cauchy_step.1} parent=5 // pred_check
        %p110 = pneg %p109
      $region14: #{_cauchy_step.1} parent=5 // pred_check_branch
        %112 = sbr.rel (%p110) target = $region16
      $region15: #{_cauchy_step.1} parent=5 // pred_region
        // Predicated region
        $region17: #{_cauchy_step.1} parent=15 // pred_check
          %p113 = pneg %p34
        $region18: #{_cauchy_step.1} parent=15 // pred_check_branch
          %115 = sbr.rel (%p113) target = $region20
        $region19: #{_cauchy_step.1} parent=15 // pred_region
          %s116 = sand.u32 %s24, 1
          %s117 = scalar_lea.sflag [#allocation3], %s116
          %s118 = sand.u32 %s24, 1
          %s119 = smul.addr %s118, 32
          %s120 = scalar_lea.vmem [#allocation2], %s119
          %s121 = smul.u32 4, %s14
          %s123 = ssub.s32 512, 512
          %124 = vsyncadd %s117, %s123
          %s125 = smul.addr %s121, 128
          %s126 = scalar_lea.hbm %s0, %s125
          %s127 = sshll.u32 %s120, 4
          %s128 = int_to_ptr.vmem [resolvable:$true] %s127
          %133 = dma.hbm_to_vmem [thread:$0]  %s126, 512, %s128, %s117, 128, 128, 8
        $region20: #{_cauchy_step.1} parent=15 // pred_fallthru
          _
        // Predicated region
        $region21: #{_cauchy_step.1} parent=15 // pred_check
          %p134 = pneg %p62
        $region22: #{_cauchy_step.1} parent=15 // pred_check_branch
          %136 = sbr.rel (%p134) target = $region24
        $region23: #{_cauchy_step.1} parent=15 // pred_region
          %s137 = sand.u32 %s52, 1
          %s138 = scalar_lea.sflag [#allocation5], %s137
          %s139 = sand.u32 %s52, 1
          %s140 = smul.addr %s139, 32
          %s141 = scalar_lea.vmem [#allocation4], %s140
          %s142 = sadd.s32 %s14, 2
          %s143 = smul.u32 4, %s142
          %s145 = ssub.s32 512, 512
          %146 = vsyncadd %s138, %s145
          %s147 = smul.addr %s143, 128
          %s148 = scalar_lea.hbm %s1, %s147
          %s149 = sshll.u32 %s141, 4
          %s150 = int_to_ptr.vmem [resolvable:$true] %s149
          %155 = dma.hbm_to_vmem [thread:$0]  %s148, 512, %s150, %s138, 128, 128, 8
        $region24: #{_cauchy_step.1} parent=15 // pred_fallthru
          _
      $region16: #{_cauchy_step.1} parent=5 // pred_fallthru
        _
      %p156 = scmp.le.s32.totalorder 1, %s14
      %p157 = scmp.lt.s32.totalorder %s14, 3
      %p158 = pnand %p156, %p157
      %p159 = pneg %p158
      // Predicated region
      $region25: #{_cauchy_step.1} parent=5 // pred_check
        _
      $region26: #{_cauchy_step.1} parent=5 // pred_check_branch
        %161 = sbr.rel (%p158) target = $region28
      $region27: #{_cauchy_step.1} parent=5 // pred_region
        %s162 = ssub.s32 %s14, 1
        %s163 = sand.u32 %s27, 1
        %s164 = scalar_lea.sflag [#allocation3], %s163
        %s165 = sand.u32 %s27, 1
        %s166 = smul.addr %s165, 32
        %s167 = scalar_lea.vmem [#allocation2], %s166
        // Predicated region
        $region29: #{_cauchy_step.1} parent=27 // pred_check
          %p168 = pneg %p40
        $region30: #{_cauchy_step.1} parent=27 // pred_check_branch
          %170 = sbr.rel (%p168) target = $region32
        $region31: #{_cauchy_step.1} parent=27 // pred_region
          %171 = dma.done %s164, 512
        $region32: #{_cauchy_step.1} parent=27 // pred_fallthru
          _
        %s172 = sand.u32 %s55, 1
        %s173 = scalar_lea.sflag [#allocation5], %s172
        %s174 = sand.u32 %s55, 1
        %s175 = smul.addr %s174, 32
        %s176 = scalar_lea.vmem [#allocation4], %s175
        // Predicated region
        $region33: #{_cauchy_step.1} parent=27 // pred_check
          %p177 = pneg %p68
        $region34: #{_cauchy_step.1} parent=27 // pred_check_branch
          %179 = sbr.rel (%p177) target = $region36
        $region35: #{_cauchy_step.1} parent=27 // pred_region
          %180 = dma.done %s173, 512
        $region36: #{_cauchy_step.1} parent=27 // pred_fallthru
          _
        %s181 = sand.u32 %s27, 1
        %s182 = scalar_lea.sflag [#allocation3], %s181
        %s183 = sand.u32 %s27, 1
        %s184 = smul.addr %s183, 32
        %s185 = scalar_lea.vmem [#allocation2], %s184
        %p186 = pneg %p40
        %p187 = pneg %p37
        %s188 = sand.u32 %s55, 1
        %s189 = scalar_lea.sflag [#allocation5], %s188
        %s190 = sand.u32 %s55, 1
        %s191 = smul.addr %s190, 32
        %s192 = scalar_lea.vmem [#allocation4], %s191
        %p193 = pneg %p68
        %p194 = pneg %p65
        %p195 = pneg %p94
        %p196 = pneg %p91
        %p197 = scmp.lt.s32.totalorder %s19, 1
        %s198 = scalar_select %p197, %s19, 1
        %s199 = smul.addr %s198, 8
        %s200 = scalar_lea.vmem %s2, %s199
        %s201 = smul.u32 4, %s19
        %s202 = sadd.s32 %s19, 2
        %s203 = smul.u32 4, %s202
        %p204 = scmp.lt.s32.totalorder %s19, 1
        %s205 = scalar_select %p204, %s19, 1
        %s206 = smul.addr %s205, 8
        %s207 = scalar_lea.vmem %s2, %s206
        %v208 = vld [vmem:[%s167] sm:$0xff]
        %v209 = vld [vmem:[%s167 + $0x8] sm:$0xff]
        %v210 = vld [vmem:[%s167 + $0x10] sm:$0xff]
        %v211 = vld [vmem:[%s167 + $0x18] sm:$0xff]
        %v212 = vld [vmem:[%s176] sm:$0xff]
        %v213 = vld [vmem:[%s176 + $0x8] sm:$0xff]
        %v214 = vld [vmem:[%s176 + $0x10] sm:$0xff]
        %v215 = vld [vmem:[%s176 + $0x18] sm:$0xff]
        %v216 = vsub.f32 %v208, %v212
        %v217 = vsub.f32 %v209, %v213
        %v218 = vsub.f32 %v210, %v214
        %v219 = vsub.f32 %v211, %v215
        %v220 = vadd.f32 %v216, 1e-06
        %v221 = vadd.f32 %v217, 1e-06
        %v222 = vadd.f32 %v218, 1e-06
        %v223 = vadd.f32 %v219, 1e-06
        %v224 = vsub.f32 1e-06, %v216
        %v225 = vsub.f32 1e-06, %v217
        %v226 = vsub.f32 1e-06, %v218
        %v227 = vsub.f32 1e-06, %v219
        %v228 = vmul.f32 %v220, %v220
        %v229 = vmul.f32 %v221, %v221
        %v230 = vmul.f32 %v222, %v222
        %v231 = vmul.f32 %v223, %v223
        %232 = vadd.xlane.f32.xlu0 %v228
        %v233 = vpop.xlane.xlu0 %232
        %234 = vadd.xlane.f32.xlu0 %v229
        %v235 = vpop.xlane.xlu0 %234
        %236 = vadd.xlane.f32.xlu0 %v230
        %v237 = vpop.xlane.xlu0 %236
        %238 = vadd.xlane.f32.xlu0 %v231
        %v239 = vpop.xlane.xlu0 %238
        %v240 = vmul.f32 %v224, %v224
        %v241 = vmul.f32 %v225, %v225
        %v242 = vmul.f32 %v226, %v226
        %v243 = vmul.f32 %v227, %v227
        %244 = vadd.xlane.f32.xlu0 %v240
        %v245 = vpop.xlane.xlu0 %244
        %246 = vadd.xlane.f32.xlu0 %v241
        %v247 = vpop.xlane.xlu0 %246
        %248 = vadd.xlane.f32.xlu0 %v242
        %v249 = vpop.xlane.xlu0 %248
        %250 = vadd.xlane.f32.xlu0 %v243
        %v251 = vpop.xlane.xlu0 %250
        %v252 = vadd.f32 %v233, 1.0
        %v253 = vadd.f32 %v235, 1.0
        %v254 = vadd.f32 %v237, 1.0
        %v255 = vadd.f32 %v239, 1.0
        %v256 = vlog2.pop %v252
        %v257 = vmul.f32 %v256, 0.6931472
        %v258 = vlog2.pop %v253
        %v259 = vmul.f32 %v258, 0.6931472
        %v260 = vlog2.pop %v254
        %v261 = vmul.f32 %v260, 0.6931472
        %v262 = vlog2.pop %v255
        %v263 = vmul.f32 %v262, 0.6931472
        %v264 = vsub.f32 %v252, 1.0
        %v265 = vsub.f32 %v253, 1.0
        %v266 = vsub.f32 %v254, 1.0
        %v267 = vsub.f32 %v255, 1.0
        %v268 = vsub.f32 %v233, %v264
        %v269 = vsub.f32 %v235, %v265
        %v270 = vsub.f32 %v237, %v266
        %v271 = vsub.f32 %v239, %v267
        %v272 = vrcp.pop %v252
        %v273 = vmul.f32 %v268, %v272
        %v274 = vrcp.pop %v253
        %v275 = vmul.f32 %v269, %v274
        %v276 = vrcp.pop %v254
        %v277 = vmul.f32 %v270, %v276
        %v278 = vrcp.pop %v255
        %v279 = vmul.f32 %v271, %v278
        %v280 = vadd.f32 %v257, %v273
        %v281 = vadd.f32 %v259, %v275
        %v282 = vadd.f32 %v261, %v277
        %v283 = vadd.f32 %v263, %v279
        %vm284 = vcmask 7168
        %v285 = vsel %vm284, %v280, 0.0
        %v286 = vsel %vm284, %v281, 0.0
        %v287 = vadd.f32 %v285, %v286
        %v288 = vsel %vm284, %v282, 0.0
        %v289 = vadd.f32 %v287, %v288
        %v290 = vsel %vm284, %v283, 0.0
        %v291 = vadd.f32 %v289, %v290
        %292 = vadd.xlane.f32.xlu0 %v291
        %v293 = vpop.xlane.xlu0 %292
        %v294 = vrot.slane %v293, 4
        %v295 = vadd.f32 %v293, %v294
        %v296 = vrot.slane %v295, 2
        %v297 = vadd.f32 %v295, %v296
        %v298 = vrot.slane %v297, 1
        %v299 = vadd.f32 %v297, %v298
        %s300 = vtos %v299
        %v301 = vadd.f32 %v245, 1.0
        %v302 = vadd.f32 %v247, 1.0
        %v303 = vadd.f32 %v249, 1.0
        %v304 = vadd.f32 %v251, 1.0
        %v305 = vlog2.pop %v301
        %v306 = vmul.f32 %v305, 0.6931472
        %v307 = vlog2.pop %v302
        %v308 = vmul.f32 %v307, 0.6931472
        %v309 = vlog2.pop %v303
        %v310 = vmul.f32 %v309, 0.6931472
        %v311 = vlog2.pop %v304
        %v312 = vmul.f32 %v311, 0.6931472
        %v313 = vsub.f32 %v301, 1.0
        %v314 = vsub.f32 %v302, 1.0
        %v315 = vsub.f32 %v303, 1.0
        %v316 = vsub.f32 %v304, 1.0
        %v317 = vsub.f32 %v245, %v313
        %v318 = vsub.f32 %v247, %v314
        %v319 = vsub.f32 %v249, %v315
        %v320 = vsub.f32 %v251, %v316
        %v321 = vrcp.pop %v301
        %v322 = vmul.f32 %v317, %v321
        %v323 = vrcp.pop %v302
        %v324 = vmul.f32 %v318, %v323
        %v325 = vrcp.pop %v303
        %v326 = vmul.f32 %v319, %v325
        %v327 = vrcp.pop %v304
        %v328 = vmul.f32 %v320, %v327
        %v329 = vadd.f32 %v306, %v322
        %v330 = vadd.f32 %v308, %v324
        %v331 = vadd.f32 %v310, %v326
        %v332 = vadd.f32 %v312, %v328
        %v333 = vsel %vm284, %v329, 0.0
        %v334 = vsel %vm284, %v330, 0.0
        %v335 = vadd.f32 %v333, %v334
        %v336 = vsel %vm284, %v331, 0.0
        %v337 = vadd.f32 %v335, %v336
        %v338 = vsel %vm284, %v332, 0.0
        %v339 = vadd.f32 %v337, %v338
        %340 = vadd.xlane.f32.xlu0 %v339
        %v341 = vpop.xlane.xlu0 %340
        %v342 = vrot.slane %v341, 4
        %v343 = vadd.f32 %v341, %v342
        %v344 = vrot.slane %v343, 2
        %v345 = vadd.f32 %v343, %v344
        %v346 = vrot.slane %v345, 1
        %v347 = vadd.f32 %v345, %v346
        %s348 = vtos %v347
        %s349 = sadd.f32 %s300, %s348
        %v350 = vrcp.pop %v252
        %v351 = vrcp.pop %v253
        %v352 = vrcp.pop %v254
        %v353 = vrcp.pop %v255
        %v354 = vsel %vm284, %v350, 0.0
        %v355 = vsel %vm284, %v351, 0.0
        %v356 = vadd.f32 %v354, %v355
        %v357 = vsel %vm284, %v352, 0.0
        %v358 = vadd.f32 %v356, %v357
        %v359 = vsel %vm284, %v353, 0.0
        %v360 = vadd.f32 %v358, %v359
        %361 = vadd.xlane.f32.xlu0 %v360
        %v362 = vpop.xlane.xlu0 %361
        %v363 = vrot.slane %v362, 4
        %v364 = vadd.f32 %v362, %v363
        %v365 = vrot.slane %v364, 2
        %v366 = vadd.f32 %v364, %v365
        %v367 = vrot.slane %v366, 1
        %v368 = vadd.f32 %v366, %v367
        %s369 = vtos %v368
        %v370 = vrcp.pop %v301
        %v371 = vrcp.pop %v302
        %v372 = vrcp.pop %v303
        %v373 = vrcp.pop %v304
        %v374 = vsel %vm284, %v370, 0.0
        %v375 = vsel %vm284, %v371, 0.0
        %v376 = vadd.f32 %v374, %v375
        %v377 = vsel %vm284, %v372, 0.0
        %v378 = vadd.f32 %v376, %v377
        %v379 = vsel %vm284, %v373, 0.0
        %v380 = vadd.f32 %v378, %v379
        %381 = vadd.xlane.f32.xlu0 %v380
        %v382 = vpop.xlane.xlu0 %381
        %v383 = vrot.slane %v382, 4
        %v384 = vadd.f32 %v382, %v383
        %v385 = vrot.slane %v384, 2
        %v386 = vadd.f32 %v384, %v385
        %v387 = vrot.slane %v386, 1
        %v388 = vadd.f32 %v386, %v387
        %s389 = vtos %v388
        %s390 = sadd.f32 %s369, %s389
        %v391 = vrot.slane %v212, 1
        %v392 = vrot.slane %v213, 1
        %v393 = vrot.slane %v214, 1
        %v394 = vrot.slane %v215, 1
        %v395 = vlaneseq
        %v396 = vshrl.u32 %v395, 7
        %vm397 = vcmp.lt.s32.totalorder %v396, 7
        %v398 = vsel %vm397, %v393, %v394
        %v399 = vsel %vm397, %v392, %v393
        %v400 = vsel %vm397, %v391, %v392
        %v401 = vsel %vm397, %v394, %v391
        %v402 = vrot.slane %v208, 1
        %v403 = vrot.slane %v209, 1
        %v404 = vrot.slane %v210, 1
        %v405 = vrot.slane %v211, 1
        %v406 = vsel %vm397, %v404, %v405
        %v407 = vsel %vm397, %v403, %v404
        %v408 = vsel %vm397, %v402, %v403
        %v409 = vsel %vm397, %v405, %v402
        %v410 = vsub.f32 %v208, %v400
        %v411 = vsub.f32 %v209, %v399
        %v412 = vsub.f32 %v210, %v398
        %v413 = vsub.f32 %v211, %v401
        %v414 = vadd.f32 %v410, 1e-06
        %v415 = vadd.f32 %v411, 1e-06
        %v416 = vadd.f32 %v412, 1e-06
        %v417 = vadd.f32 %v413, 1e-06
        %v418 = vsub.f32 %v212, %v408
        %v419 = vsub.f32 %v213, %v407
        %v420 = vsub.f32 %v214, %v406
        %v421 = vsub.f32 %v215, %v409
        %v422 = vadd.f32 %v418, 1e-06
        %v423 = vadd.f32 %v419, 1e-06
        %v424 = vadd.f32 %v420, 1e-06
        %v425 = vadd.f32 %v421, 1e-06
        %v426 = vmul.f32 %v414, %v414
        %v427 = vmul.f32 %v415, %v415
        %v428 = vmul.f32 %v416, %v416
        %v429 = vmul.f32 %v417, %v417
        %430 = vadd.xlane.f32.xlu0 %v426
        %v431 = vpop.xlane.xlu0 %430
        %432 = vadd.xlane.f32.xlu0 %v427
        %v433 = vpop.xlane.xlu0 %432
        %434 = vadd.xlane.f32.xlu0 %v428
        %v435 = vpop.xlane.xlu0 %434
        %436 = vadd.xlane.f32.xlu0 %v429
        %v437 = vpop.xlane.xlu0 %436
        %v438 = vadd.f32 %v431, 1.0
        %v439 = vadd.f32 %v433, 1.0
        %v440 = vadd.f32 %v435, 1.0
        %v441 = vadd.f32 %v437, 1.0
        %v442 = vrcp.pop %v438
        %v443 = vmul.f32 1.0, %v442
        %v444 = vrcp.pop %v439
        %v445 = vmul.f32 1.0, %v444
        %v446 = vrcp.pop %v440
        %v447 = vmul.f32 1.0, %v446
        %v448 = vrcp.pop %v441
        %v449 = vmul.f32 1.0, %v448
        %v450 = vmul.f32 %v422, %v422
        %v451 = vmul.f32 %v423, %v423
        %v452 = vmul.f32 %v424, %v424
        %v453 = vmul.f32 %v425, %v425
        %454 = vadd.xlane.f32.xlu0 %v450
        %v455 = vpop.xlane.xlu0 %454
        %456 = vadd.xlane.f32.xlu0 %v451
        %v457 = vpop.xlane.xlu0 %456
        %458 = vadd.xlane.f32.xlu0 %v452
        %v459 = vpop.xlane.xlu0 %458
        %460 = vadd.xlane.f32.xlu0 %v453
        %v461 = vpop.xlane.xlu0 %460
        %v462 = vadd.f32 %v455, 1.0
        %v463 = vadd.f32 %v457, 1.0
        %v464 = vadd.f32 %v459, 1.0
        %v465 = vadd.f32 %v461, 1.0
        %v466 = vrcp.pop %v462
        %v467 = vmul.f32 1.0, %v466
        %v468 = vrcp.pop %v463
        %v469 = vmul.f32 1.0, %v468
        %v470 = vrcp.pop %v464
        %v471 = vmul.f32 1.0, %v470
        %v472 = vrcp.pop %v465
        %v473 = vmul.f32 1.0, %v472
        %v474 = vadd.s32 %v396, 8
        %v475 = vadd.s32 %v396, 16
        %v476 = vadd.s32 %v396, 24
        %vm477 = vcmp.lt.s32.totalorder %v396, 31
        %vm478 = vcmp.lt.s32.totalorder %v474, 31
        %vm479 = vcmp.lt.s32.totalorder %v475, 31
        %vm480 = vcmp.lt.s32.totalorder %v476, 31
        %v481 = vadd.f32 %v443, %v467
        %v482 = vadd.f32 %v445, %v469
        %v483 = vadd.f32 %v447, %v471
        %v484 = vadd.f32 %v449, %v473
        %v485 = vsel %vm477, %v481, 0.0
        %v486 = vsel %vm478, %v482, 0.0
        %v487 = vsel %vm479, %v483, 0.0
        %v488 = vsel %vm480, %v484, 0.0
        %v489 = vsel %vm284, %v485, 0.0
        %v490 = vsel %vm284, %v486, 0.0
        %v491 = vadd.f32 %v489, %v490
        %v492 = vsel %vm284, %v487, 0.0
        %v493 = vadd.f32 %v491, %v492
        %v494 = vsel %vm284, %v488, 0.0
        %v495 = vadd.f32 %v493, %v494
        %496 = vadd.xlane.f32.xlu0 %v495
        %v497 = vpop.xlane.xlu0 %496
        %v498 = vrot.slane %v497, 4
        %v499 = vadd.f32 %v497, %v498
        %v500 = vrot.slane %v499, 2
        %v501 = vadd.f32 %v499, %v500
        %v502 = vrot.slane %v501, 1
        %v503 = vadd.f32 %v501, %v502
        %s504 = vtos %v503
        %v505 = vlaneseq
        %v506 = vand.u32 %v505, 127
        %vm507 = vcmp.eq.s32.totalorder %v506, 0
        %vm508 = vcmp.eq.s32.totalorder %v506, 1
        %vm509 = vcmp.eq.s32.totalorder %v506, 2
        %v510 = vstv %s504
        %v511 = vsel %vm509, %v510, 0.0
        %v512 = vstv %s390
        %v513 = vsel %vm508, %v512, %v511
        %v514 = vstv %s349
        %v515 = vsel %vm507, %v514, %v513
        %516 = vst [vmem:[%s207] sm:$0xff] %v515
        %p517 = scmp.lt.s32.totalorder %s19, 1
        %s518 = scalar_select %p517, %s19, 1
        %s519 = smul.addr %s518, 8
        %s520 = scalar_lea.vmem %s2, %s519
        // Predicated region
        $region37: #{_cauchy_step.1} parent=27 // pred_check
          %p521 = pneg %p91
        $region38: #{_cauchy_step.1} parent=27 // pred_check_branch
          %523 = sbr.rel (%p521) target = $region40
        $region39: #{_cauchy_step.1} parent=27 // pred_region
          _
        $region40: #{_cauchy_step.1} parent=27 // pred_fallthru
          _
      $region28: #{_cauchy_step.1} parent=5 // pred_fallthru
        _
      %p524 = scmp.le.s32.totalorder 2, %s14
      // Predicated region
      $region41: #{_cauchy_step.1} parent=5 // pred_check
        %p525 = pneg %p524
      $region42: #{_cauchy_step.1} parent=5 // pred_check_branch
        %527 = sbr.rel (%p525) target = $region44
      $region43: #{_cauchy_step.1} parent=5 // pred_region
        %s528 = ssub.s32 %s14, 2
        // Predicated region
        $region45: #{_cauchy_step.1} parent=43 // pred_check
          %p529 = pneg %p97
        $region46: #{_cauchy_step.1} parent=43 // pred_check_branch
          %531 = sbr.rel (%p529) target = $region48
        $region47: #{_cauchy_step.1} parent=43 // pred_region
          %p532 = scmp.lt.s32.totalorder %s20, 1
          %s533 = scalar_select %p532, %s20, 1
          %s534 = smul.addr %s533, 8
          %s535 = scalar_lea.vmem %s2, %s534
        $region48: #{_cauchy_step.1} parent=43 // pred_fallthru
          _
      $region44: #{_cauchy_step.1} parent=5 // pred_fallthru
        _
    $region6: #{_cauchy_step.1} parent=1 // loop_footer
      %s18 = sadd.s32 1, %s14
    $region7: #{_cauchy_step.1} parent=1 // loop_footer_branch
      %13 = sbr.rel target = $region3
    $region8: #{_cauchy_step.1} parent=1 // loop_exit
      _
    %536 = vsyncpa [#allocation3], 1
    %s537 = scalar_lea.sflag [#allocation3], 1
    %538 = vsyncpa %s537, 1
    %539 = vsyncpa [#allocation5], 1
    %s540 = scalar_lea.sflag [#allocation5], 1
    %541 = vsyncpa %s540, 1

</llo_original>
